<compile_context>
chip_gen: v7x
topology: tpu7x:2x2x1
jax: 0.10.0
libtpu: 0.0.40
codegen_flags: <defaults>
</compile_context>

<pallas_src>
import functools

import jax
import jax.numpy as jnp
from jax.experimental import pallas as pl
from jax.experimental.pallas import tpu as pltpu

LANE = 128                  # padded width of every hidden layer
OUT_DIM = 2                 # real output width of fc6
N_LAYERS = 6
COMPUTE_DTYPE = jnp.bfloat16

SUB_ROWS = 256              # in-kernel sub-block: 6-layer chain stays in vregs
MAX_BATCH_TILE = 8192       # upper bound on rows per grid step
MIN_GRID_STEPS = 4          # keep >= 4 grid steps on big batches (v7x: 2 TCs)
VMEM_LIMIT_BYTES = 32 * 1024 * 1024   # raise v5e's 16 MiB default; safe on v6e/v7x
VMEM_TILE_BUDGET = 24 * 1024 * 1024   # what the x/out tiles may consume


def _round_up(x, m):
    return (x + m - 1) // m * m


def _cdiv(a, b):
    return (a + b - 1) // b


def _censusnet_kernel(x_ref, w_ref, b_ref, o_ref, *, f_pad, sub):
    """Fused forward over one batch tile, sub-blocked into `sub`-row chunks.

    x_ref: (TB, f_pad) f32      w_ref: (f_pad + 5*128, 128) bf16 (zero padded)
    b_ref: (8, 128) f32         o_ref: (TB, 2) f32
    """
    mxu_dtype = w_ref.dtype
    n_sub = x_ref.shape[0] // sub                 # static
    # Hoist the six (1,128) bias rows out of the sub-block loop.
    biases = [b_ref[l:l + 1, :] for l in range(N_LAYERS)]

    @pl.loop(0, n_sub)
    def _(s):
        r0 = pl.multiple_of(s * sub, sub)
        # In-kernel bf16 cast: x arrives from HBM in its original f32, so the
        # wrapper never materializes a bf16 copy of x in HBM.
        h = x_ref[pl.ds(r0, sub), :].astype(mxu_dtype)        # (sub, f_pad) bf16
        row, fan_in = 0, f_pad
        z = None
        for layer in range(N_LAYERS):
            w = w_ref[row:row + fan_in, :]                     # static, 8-row aligned
            z = jnp.dot(h, w, preferred_element_type=jnp.float32)   # MXU, f32 acc
            z = z + biases[layer]                              # f32 VPU bias add
            row += fan_in
            fan_in = LANE
            if layer < N_LAYERS - 1:
                h = jnp.maximum(z, 0.0).astype(mxu_dtype)      # ReLU, bf16 for next MXU
        # Final layer has no ReLU; store only the 2 real output columns.
        o_ref[pl.ds(r0, sub), :] = z[:, :OUT_DIM].astype(o_ref.dtype)


def init_params(key, num_of_features):
    """torch.nn.Linear-style init: W, b ~ U(-1/sqrt(fan_in), 1/sqrt(fan_in)).
    Weights stored pre-transposed as (in_features, out_features)."""
    dims = [num_of_features, 64, 32, 16, 8, 4, 2]
    params = []
    for i in range(N_LAYERS):
        fan_in, fan_out = dims[i], dims[i + 1]
        key, kw, kb = jax.random.split(key, 3)
        bound = 1.0 / (fan_in ** 0.5)
        w = jax.random.uniform(kw, (fan_in, fan_out), jnp.float32, -bound, bound)
        b = jax.random.uniform(kb, (1, fan_out), jnp.float32, -bound, bound)
        params.append((w, b))
    return params


def _pack_params(params, f_pad, compute_dtype):
    """Pack 6 (W, b) pairs into one zero-padded weight slab + one bias slab."""
    n_rows = f_pad + (N_LAYERS - 1) * LANE
    w_slab = jnp.zeros((n_rows, LANE), jnp.float32)
    b_slab = jnp.zeros((8, LANE), jnp.float32)
    row = 0
    for i, (w, b) in enumerate(params):
        fan_in, fan_out = w.shape
        w_slab = w_slab.at[row:row + fan_in, :fan_out].set(w.astype(jnp.float32))
        b_slab = b_slab.at[i, :fan_out].set(jnp.reshape(b, (-1,)).astype(jnp.float32))
        row += f_pad if i == 0 else LANE
    return w_slab.astype(compute_dtype), b_slab   # biases stay f32 (VPU add in f32)


def _choose_tiles(batch, f_pad):
    """Pick (batch_tile, sub_block) from the VMEM budget and grid-step floor."""
    # Per-row VMEM bytes: double-buffered f32 x tile + lane-padded f32 out tile.
    per_row = 2 * 4 * f_pad + 2 * 4 * LANE
    tb_cap = (VMEM_TILE_BUDGET // per_row) // SUB_ROWS * SUB_ROWS
    tb_cap = max(SUB_ROWS, min(tb_cap, MAX_BATCH_TILE))
    if batch <= SUB_ROWS:
        tb = _round_up(max(batch, 1), 8)          # one small tile, sublane aligned
        sub = tb
    else:
        # Aim for >= MIN_GRID_STEPS grid steps so v7x's two TensorCores both work.
        tb_target = _round_up(_cdiv(batch, MIN_GRID_STEPS), SUB_ROWS)
        tb = min(tb_cap, tb_target)
        sub = SUB_ROWS
    return tb, sub


@jax.jit
def censusnet_forward(x, params):
    # Glue: torch.flatten(x, 1) (metadata-only for contiguous input).
    batch = x.shape[0]
    x2d = jnp.reshape(x, (batch, -1))
    if not jnp.issubdtype(x2d.dtype, jnp.floating):
        x2d = x2d.astype(jnp.float32)
    num_of_features = x2d.shape[1]

    # Pad features to a sublane multiple so all weight-slab slices stay
    # 8-row aligned (no-op when num_of_features % 8 == 0, as in the demo).
    f_pad = _round_up(num_of_features, 8)
    if f_pad != num_of_features:
        x2d = jnp.pad(x2d, ((0, 0), (0, f_pad - num_of_features)))

    tb, sub = _choose_tiles(batch, f_pad)
    grid = _cdiv(batch, tb)                        # no batch padding: ragged last block

    w_slab, b_slab = _pack_params(params, f_pad, COMPUTE_DTYPE)

    # Advisory cost: report the *padded* MXU work the kernel actually issues.
    flops = 2 * batch * (f_pad * LANE + (N_LAYERS - 1) * LANE * LANE)
    bytes_accessed = (x2d.size * x2d.dtype.itemsize
                      + w_slab.size * w_slab.dtype.itemsize
                      + b_slab.size * b_slab.dtype.itemsize
                      + batch * OUT_DIM * 4)

    kernel = functools.partial(_censusnet_kernel, f_pad=f_pad, sub=sub)
    out = pl.pallas_call(
        kernel,
        out_shape=jax.ShapeDtypeStruct((batch, OUT_DIM), jnp.float32),
        grid_spec=pltpu.PrefetchScalarGridSpec(
            num_scalar_prefetch=0,
            grid=(grid,),
            in_specs=[
                pl.BlockSpec((tb, f_pad), lambda i: (i, 0)),      # batch-tiled x (f32)
                pl.BlockSpec(w_slab.shape, lambda i: (0, 0)),     # weights: VMEM-resident
                pl.BlockSpec(b_slab.shape, lambda i: (0, 0)),     # biases: VMEM-resident
            ],
            out_specs=pl.BlockSpec((tb, OUT_DIM), lambda i: (i, 0)),
        ),
        compiler_params=pltpu.CompilerParams(
            dimension_semantics=("parallel",),
            vmem_limit_bytes=VMEM_LIMIT_BYTES),
        cost_estimate=pl.CostEstimate(
            flops=flops, transcendentals=0, bytes_accessed=bytes_accessed),
    )(x2d, w_slab, b_slab)

    return out


def censusnet_forward_ref(x, params, compute_dtype=jnp.float32):
    """Pure-JAX reference (optionally with the same bf16 operand cast)."""
    h = jnp.reshape(x, (x.shape[0], -1)).astype(jnp.float32)
    for i, (w, b) in enumerate(params):
        h = jnp.dot(h.astype(compute_dtype), w.astype(compute_dtype),
                    preferred_element_type=jnp.float32) + b
        if i < N_LAYERS - 1:
            h = jnp.maximum(h, 0.0)
    return h


if __name__ == "__main__":
    key = jax.random.PRNGKey(0)
    k_in, k_par = jax.random.split(key)

    # Small example: batch=2, a (4, 4) "feature map" flattened to 16 features.
    num_of_features = 16
    x = jax.random.normal(k_in, (2, 4, 4), jnp.float32)
    params = init_params(k_par, num_of_features)

    out = jax.block_until_ready(censusnet_forward(x, params))
    assert out.shape == (2, 2), out.shape

    # Exact-math reference (same bf16 operands / f32 accumulate as the kernel).
    ref_match = censusnet_forward_ref(x, params, compute_dtype=COMPUTE_DTYPE)
    assert jnp.allclose(out, ref_match, atol=2e-3, rtol=2e-3), (out, ref_match)

    # Loose check against the full-f32 reference (bf16 operand quantization).
    ref_f32 = censusnet_forward_ref(x, params, compute_dtype=jnp.float32)
    assert jnp.allclose(out, ref_f32, atol=1e-1, rtol=1e-1), (out, ref_f32)

    print("KERNEL_OK")
</pallas_src>

<mosaic_0001>
module attributes {stable_mosaic.version = 11 : i64} {
  func.func @_censusnet_kernel(%arg0: i32, %arg1: memref<8x16xf32, #tpu.memory_space<vmem>>, %arg2: memref<656x128xbf16, #tpu.memory_space<vmem>>, %arg3: memref<8x128xf32, #tpu.memory_space<vmem>>, %arg4: memref<8x2xf32, #tpu.memory_space<vmem>>) attributes {dimension_semantics = [#tpu.dimension_semantics<parallel>], iteration_bounds = array<i64: 1>, scalar_prefetch = 0 : i64, scratch_operands = 0 : i64, tpu.core_type = #tpu.core_type<tc>, window_params = [{transform_indices = @transform_0, window_bounds = array<i64: 8, 16>}, {pipeline_mode = #tpu.pipeline_mode<synchronous>, transform_indices = @transform_1, window_bounds = array<i64: 656, 128>}, {pipeline_mode = #tpu.pipeline_mode<synchronous>, transform_indices = @transform_2, window_bounds = array<i64: 8, 128>}, {transform_indices = @transform_3, window_bounds = array<i64: 8, 2>}]} {
    %c0 = arith.constant 0 : index
    %c0_0 = arith.constant 0 : index
    %0 = vector.load %arg3[%c0, %c0_0] : memref<8x128xf32, #tpu.memory_space<vmem>>, vector<1x128xf32>
    %c1 = arith.constant 1 : index
    %c0_1 = arith.constant 0 : index
    %1 = vector.load %arg3[%c1, %c0_1] : memref<8x128xf32, #tpu.memory_space<vmem>>, vector<1x128xf32>
    %c2 = arith.constant 2 : index
    %c0_2 = arith.constant 0 : index
    %2 = vector.load %arg3[%c2, %c0_2] : memref<8x128xf32, #tpu.memory_space<vmem>>, vector<1x128xf32>
    %c3 = arith.constant 3 : index
    %c0_3 = arith.constant 0 : index
    %3 = vector.load %arg3[%c3, %c0_3] : memref<8x128xf32, #tpu.memory_space<vmem>>, vector<1x128xf32>
    %c4 = arith.constant 4 : index
    %c0_4 = arith.constant 0 : index
    %4 = vector.load %arg3[%c4, %c0_4] : memref<8x128xf32, #tpu.memory_space<vmem>>, vector<1x128xf32>
    %c5 = arith.constant 5 : index
    %c0_5 = arith.constant 0 : index
    %5 = vector.load %arg3[%c5, %c0_5] : memref<8x128xf32, #tpu.memory_space<vmem>>, vector<1x128xf32>
    %c0_i32 = arith.constant 0 : i32
    %c1_i32 = arith.constant 1 : i32
    %6 = arith.muli %c0_i32, %c1_i32 : i32
    %c0_i32_6 = arith.constant 0 : i32
    %7 = arith.addi %c0_i32_6, %6 : i32
    %c8_i32 = arith.constant 8 : i32
    %8 = arith.muli %7, %c8_i32 : i32
    %9 = tpu.assume_multiple %8, 8 : i32
    %10 = arith.index_cast %9 : i32 to index
    %c0_7 = arith.constant 0 : index
    %11 = vector.load %arg1[%10, %c0_7] : memref<8x16xf32, #tpu.memory_space<vmem>>, vector<8x16xf32>
    %12 = arith.truncf %11 : vector<8x16xf32> to vector<8x16xbf16>
    %c0_8 = arith.constant 0 : index
    %c0_9 = arith.constant 0 : index
    %13 = vector.load %arg2[%c0_8, %c0_9] : memref<656x128xbf16, #tpu.memory_space<vmem>>, vector<16x128xbf16>
    %cst = arith.constant dense<0.000000e+00> : vector<8x128xf32>
    %14 = tpu.matmul %12, %13, %cst {dimension_numbers = #tpu.dot_dimension_numbers<[1], [0], [0], [1], [0, 0, 1, 1], [], []>} : vector<8x16xbf16>, vector<16x128xbf16>, vector<8x128xf32> -> vector<8x128xf32>
    %15 = vector.broadcast %0 : vector<1x128xf32> to vector<8x128xf32>
    %16 = arith.addf %14, %15 : vector<8x128xf32>
    %cst_10 = arith.constant 0.000000e+00 : f32
    %17 = vector.broadcast %cst_10 : f32 to vector<8x128xf32>
    %18 = arith.maximumf %16, %17 : vector<8x128xf32>
    %19 = arith.truncf %18 : vector<8x128xf32> to vector<8x128xbf16>
    %c16 = arith.constant 16 : index
    %c0_11 = arith.constant 0 : index
    %20 = vector.load %arg2[%c16, %c0_11] : memref<656x128xbf16, #tpu.memory_space<vmem>>, vector<128x128xbf16>
    %cst_12 = arith.constant dense<0.000000e+00> : vector<8x128xf32>
    %21 = tpu.matmul %19, %20, %cst_12 {dimension_numbers = #tpu.dot_dimension_numbers<[1], [0], [0], [1], [0, 0, 1, 1], [], []>} : vector<8x128xbf16>, vector<128x128xbf16>, vector<8x128xf32> -> vector<8x128xf32>
    %22 = vector.broadcast %1 : vector<1x128xf32> to vector<8x128xf32>
    %23 = arith.addf %21, %22 : vector<8x128xf32>
    %cst_13 = arith.constant 0.000000e+00 : f32
    %24 = vector.broadcast %cst_13 : f32 to vector<8x128xf32>
    %25 = arith.maximumf %23, %24 : vector<8x128xf32>
    %26 = arith.truncf %25 : vector<8x128xf32> to vector<8x128xbf16>
    %c144 = arith.constant 144 : index
    %c0_14 = arith.constant 0 : index
    %27 = vector.load %arg2[%c144, %c0_14] : memref<656x128xbf16, #tpu.memory_space<vmem>>, vector<128x128xbf16>
    %cst_15 = arith.constant dense<0.000000e+00> : vector<8x128xf32>
    %28 = tpu.matmul %26, %27, %cst_15 {dimension_numbers = #tpu.dot_dimension_numbers<[1], [0], [0], [1], [0, 0, 1, 1], [], []>} : vector<8x128xbf16>, vector<128x128xbf16>, vector<8x128xf32> -> vector<8x128xf32>
    %29 = vector.broadcast %2 : vector<1x128xf32> to vector<8x128xf32>
    %30 = arith.addf %28, %29 : vector<8x128xf32>
    %cst_16 = arith.constant 0.000000e+00 : f32
    %31 = vector.broadcast %cst_16 : f32 to vector<8x128xf32>
    %32 = arith.maximumf %30, %31 : vector<8x128xf32>
    %33 = arith.truncf %32 : vector<8x128xf32> to vector<8x128xbf16>
    %c272 = arith.constant 272 : index
    %c0_17 = arith.constant 0 : index
    %34 = vector.load %arg2[%c272, %c0_17] : memref<656x128xbf16, #tpu.memory_space<vmem>>, vector<128x128xbf16>
    %cst_18 = arith.constant dense<0.000000e+00> : vector<8x128xf32>
    %35 = tpu.matmul %33, %34, %cst_18 {dimension_numbers = #tpu.dot_dimension_numbers<[1], [0], [0], [1], [0, 0, 1, 1], [], []>} : vector<8x128xbf16>, vector<128x128xbf16>, vector<8x128xf32> -> vector<8x128xf32>
    %36 = vector.broadcast %3 : vector<1x128xf32> to vector<8x128xf32>
    %37 = arith.addf %35, %36 : vector<8x128xf32>
    %cst_19 = arith.constant 0.000000e+00 : f32
    %38 = vector.broadcast %cst_19 : f32 to vector<8x128xf32>
    %39 = arith.maximumf %37, %38 : vector<8x128xf32>
    %40 = arith.truncf %39 : vector<8x128xf32> to vector<8x128xbf16>
    %c400 = arith.constant 400 : index
    %c0_20 = arith.constant 0 : index
    %41 = vector.load %arg2[%c400, %c0_20] : memref<656x128xbf16, #tpu.memory_space<vmem>>, vector<128x128xbf16>
    %cst_21 = arith.constant dense<0.000000e+00> : vector<8x128xf32>
    %42 = tpu.matmul %40, %41, %cst_21 {dimension_numbers = #tpu.dot_dimension_numbers<[1], [0], [0], [1], [0, 0, 1, 1], [], []>} : vector<8x128xbf16>, vector<128x128xbf16>, vector<8x128xf32> -> vector<8x128xf32>
    %43 = vector.broadcast %4 : vector<1x128xf32> to vector<8x128xf32>
    %44 = arith.addf %42, %43 : vector<8x128xf32>
    %cst_22 = arith.constant 0.000000e+00 : f32
    %45 = vector.broadcast %cst_22 : f32 to vector<8x128xf32>
    %46 = arith.maximumf %44, %45 : vector<8x128xf32>
    %47 = arith.truncf %46 : vector<8x128xf32> to vector<8x128xbf16>
    %c528 = arith.constant 528 : index
    %c0_23 = arith.constant 0 : index
    %48 = vector.load %arg2[%c528, %c0_23] : memref<656x128xbf16, #tpu.memory_space<vmem>>, vector<128x128xbf16>
    %cst_24 = arith.constant dense<0.000000e+00> : vector<8x128xf32>
    %49 = tpu.matmul %47, %48, %cst_24 {dimension_numbers = #tpu.dot_dimension_numbers<[1], [0], [0], [1], [0, 0, 1, 1], [], []>} : vector<8x128xbf16>, vector<128x128xbf16>, vector<8x128xf32> -> vector<8x128xf32>
    %50 = vector.broadcast %5 : vector<1x128xf32> to vector<8x128xf32>
    %51 = arith.addf %49, %50 : vector<8x128xf32>
    %52 = vector.extract_strided_slice %51 {offsets = [0, 0], sizes = [8, 2], strides = [1, 1]} : vector<8x128xf32> to vector<8x2xf32>
    %53 = arith.index_cast %9 : i32 to index
    %c0_25 = arith.constant 0 : index
    %54 = vector.load %arg4[%53, %c0_25] : memref<8x2xf32, #tpu.memory_space<vmem>>, vector<8x2xf32>
    tpu.vector_store %arg4[%53, %c0_25], %52 {strides = array<i32>} : memref<8x2xf32, #tpu.memory_space<vmem>>, vector<8x2xf32>,
    %c1_i32_26 = arith.constant 1 : i32
    return
  }
  func.func @transform_0(%arg0: i32) -> (i32, i32) {
    %c0_i32 = arith.constant 0 : i32
    %c0_i32_0 = arith.constant 0 : i32
    return %arg0, %c0_i32 : i32, i32
  }
  func.func @transform_1(%arg0: i32) -> (i32, i32) {
    %c0_i32 = arith.constant 0 : i32
    %c0_i32_0 = arith.constant 0 : i32
    %c0_i32_1 = arith.constant 0 : i32
    return %c0_i32, %c0_i32_0 : i32, i32
  }
  func.func @transform_2(%arg0: i32) -> (i32, i32) {
    %c0_i32 = arith.constant 0 : i32
    %c0_i32_0 = arith.constant 0 : i32
    %c0_i32_1 = arith.constant 0 : i32
    return %c0_i32, %c0_i32_0 : i32, i32
  }
  func.func @transform_3(%arg0: i32) -> (i32, i32) {
    %c0_i32 = arith.constant 0 : i32
    %c0_i32_0 = arith.constant 0 : i32
    return %arg0, %c0_i32 : i32, i32
  }
}

</mosaic_0001>

<llo_original>
// kernel: censusnet_forward.1
$region0: #{censusnet_forward.1}
  #allocation0 [shape = 'u32[]', space=smem, size = 0x4, offset = 0x4, fixed_abs, tag = 'smem constant byte address 0x4 - core index']
  #allocation1 [shape = 'u32[144,128]{1,0:T(1,128)}', space=vmem, size = 0x12000, scoped, tag = 'internal scratch']
  %s0 = inlined_call_operand.vmem [shape: f32[2,16], index: 0, kind: input, shape index: {}]
  %s1 = inlined_call_operand.vmem [shape: bf16[656,128], index: 1, kind: input, shape index: {}]
  %s2 = inlined_call_operand.vmem [shape: f32[8,128], index: 2, kind: input, shape index: {}]
  %s3 = inlined_call_operand.hbm [shape: f32[2,2], index: 3, kind: output, shape index: {}]
  %s4 = sld [smem:[#allocation0]]
  $region22: #{censusnet_forward.1} parent=0
    _
  %s6 = ssub.s32 1, %s4
  %s7 = scalar_select 0, %s6, %s4
  $region1: #{censusnet_forward.1} parent=0
    #allocation2 [shape = 'u8[4096]{0}', space=vmem, size = 0x1000, scoped, tag = 'output window, operand 0, single buffered']
    #allocation3 [shape = 's32[1]{0}', space=sflag, size = 0x4, scoped, tag = 'scoped memory for censusnet_forward.1']
    %8 = vsyncpa [#allocation3], 0
    // Predicated region
    $region2: #{censusnet_forward.1} parent=1 // pred_check
      _
    $region3: #{censusnet_forward.1} parent=1 // pred_check_branch
      %10 = sbr.rel (0) target = $region5
    $region4: #{censusnet_forward.1} parent=1 // pred_region
      _
    $region5: #{censusnet_forward.1} parent=1 // pred_fallthru
      _
    // Predicated region
    $region6: #{censusnet_forward.1} parent=1 // pred_check
      _
    $region7: #{censusnet_forward.1} parent=1 // pred_check_branch
      %12 = sbr.rel (0) target = $region9
    $region8: #{censusnet_forward.1} parent=1 // pred_region
      _
    $region9: #{censusnet_forward.1} parent=1 // pred_fallthru
      _
    // Predicated region
    $region10: #{censusnet_forward.1} parent=1 // pred_check
      _
    $region11: #{censusnet_forward.1} parent=1 // pred_check_branch
      %14 = sbr.rel (0) target = $region13
    $region12: #{censusnet_forward.1} parent=1 // pred_region
      _
    $region13: #{censusnet_forward.1} parent=1 // pred_fallthru
      _
    %v16 = vld [vmem:[%s2] sm:$0x1]
    %v17 = vld [vmem:[%s2 + $0x1] sm:$0x1]
    %v18 = vld [vmem:[%s2 + $0x2] sm:$0x1]
    %v19 = vld [vmem:[%s2 + $0x3] sm:$0x1]
    %v20 = vld [vmem:[%s2 + $0x4] sm:$0x1]
    %v21 = vld [vmem:[%s2 + $0x5] sm:$0x1]
    %v22 = vld [vmem:[%s0] sm:$0xff]
    %v23 = vpack.c.bf16 %v22, %v22
    %v24 = vld [vmem:[%s1] sm:$0xf]
    %v25 = vld [vmem:[%s1 + $0x4] sm:$0xf]
    %v26 = vlaneseq
    %v27 = vshrl.u32 %v26, 7
    %v28 = vsub.s32 0, %v27
    %v29 = vrot.slane %v16, %v28
    %v32 = vunpack.c.l.b16 %v24
    %v33 = vunpack.c.l.b16 %v25
    %v34 = vpack.c.b16 %v33, %v32
    %vm36 = vcmask 130048
    %v38 = vsel %vm36, %v23, 0
    %40 = vmatprep.subr.bf16.mxu0 0
    %41 = vmatpush1.bf16.msra.mxu0 %v34
    %42 = vmatprep.subr.bf16.mxu0 0
    %43 = vmatpush1.bf16.msra.mxu0 0
    %44 = vmatprep.subr.bf16.mxu0 0
    %45 = vmatpush1.bf16.msra.mxu0 0
    %46 = vmatprep.subr.bf16.mxu0 0
    %47 = vmatpush1.bf16.msra.mxu0 0
    %48 = vmatprep.subr.bf16.mxu0 0
    %49 = vmatpush1.bf16.msra.mxu0 0
    %50 = vmatprep.subr.bf16.mxu0 0
    %51 = vmatpush1.bf16.msra.mxu0 0
    %52 = vmatprep.subr.bf16.mxu0 0
    %53 = vmatpush1.bf16.msra.mxu0 0
    %54 = vmatprep.subr.bf16.mxu0 0
    %55 = vmatpush1.bf16.msra.mxu0 0
    %56 = vmatprep.subr.bf16.mxu0 0
    %57 = vmatpush1.bf16.msra.mxu0 0
    %58 = vmatprep.subr.bf16.mxu0 0
    %59 = vmatpush1.bf16.msra.mxu0 0
    %60 = vmatprep.subr.bf16.mxu0 0
    %61 = vmatpush1.bf16.msra.mxu0 0
    %62 = vmatprep.subr.bf16.mxu0 0
    %63 = vmatpush1.bf16.msra.mxu0 0
    %64 = vmatprep.subr.bf16.mxu0 0
    %65 = vmatpush1.bf16.msra.mxu0 0
    %66 = vmatprep.subr.bf16.mxu0 0
    %67 = vmatpush1.bf16.msra.mxu0 0
    %68 = vmatprep.subr.bf16.mxu0 0
    %69 = vmatpush1.bf16.msra.mxu0 0
    %70 = vmatprep.subr.bf16.mxu0 0
    %71 = vmatpush1.bf16.msra.mxu0 0
    %72 = vmatprep.mubr.bf16.mxu0 0
    %73 = vmatmul.mubr.bf16.gmra.mrb[0].mxu0 %v38
    %v74 = vpop.f32.mrb[0].mxu0
    %v75 = vadd.f32 %v29, %v74
    %v76 = vpop.f32.mrb[0].mxu0
    %v77 = vpop.f32.mrb[0].mxu0
    %v78 = vpop.f32.mrb[0].mxu0
    %79 = vdwg.mxu0
    %v80 = vmax.f32 %v75, 0.0
    %v81 = vpack.c.bf16 %v80, %v80
    %v82 = vld [vmem:[%s1 + $0x8] sm:$0xf]
    %v83 = vld [vmem:[%s1 + $0xc] sm:$0xf]
    %v84 = vld [vmem:[%s1 + $0x10] sm:$0xf]
    %v85 = vld [vmem:[%s1 + $0x14] sm:$0xf]
    %v86 = vld [vmem:[%s1 + $0x18] sm:$0xf]
    %v87 = vld [vmem:[%s1 + $0x1c] sm:$0xf]
    %v88 = vld [vmem:[%s1 + $0x20] sm:$0xf]
    %v89 = vld [vmem:[%s1 + $0x24] sm:$0xf]
    %v90 = vld [vmem:[%s1 + $0x28] sm:$0xf]
    %v91 = vld [vmem:[%s1 + $0x2c] sm:$0xf]
    %v92 = vld [vmem:[%s1 + $0x30] sm:$0xf]
    %v93 = vld [vmem:[%s1 + $0x34] sm:$0xf]
    %v94 = vld [vmem:[%s1 + $0x38] sm:$0xf]
    %v95 = vld [vmem:[%s1 + $0x3c] sm:$0xf]
    %v96 = vld [vmem:[%s1 + $0x40] sm:$0xf]
    %v97 = vld [vmem:[%s1 + $0x44] sm:$0xf]
    %v98 = vlaneseq
    %v99 = vshrl.u32 %v98, 7
    %v100 = vsub.s32 0, %v99
    %v101 = vrot.slane %v17, %v100
    %v118 = vunpack.c.l.b16 %v82
    %v119 = vunpack.c.l.b16 %v83
    %v120 = vunpack.c.l.b16 %v84
    %v121 = vunpack.c.l.b16 %v85
    %v122 = vunpack.c.l.b16 %v86
    %v123 = vunpack.c.l.b16 %v87
    %v124 = vunpack.c.l.b16 %v88
    %v125 = vunpack.c.l.b16 %v89
    %v126 = vunpack.c.l.b16 %v90
    %v127 = vunpack.c.l.b16 %v91
    %v128 = vunpack.c.l.b16 %v92
    %v129 = vunpack.c.l.b16 %v93
    %v130 = vunpack.c.l.b16 %v94
    %v131 = vunpack.c.l.b16 %v95
    %v132 = vunpack.c.l.b16 %v96
    %v133 = vunpack.c.l.b16 %v97
    %v134 = vpack.c.b16 %v119, %v118
    %v135 = vpack.c.b16 %v121, %v120
    %v136 = vpack.c.b16 %v123, %v122
    %v137 = vpack.c.b16 %v125, %v124
    %v138 = vpack.c.b16 %v127, %v126
    %v139 = vpack.c.b16 %v129, %v128
    %v140 = vpack.c.b16 %v131, %v130
    %v141 = vpack.c.b16 %v133, %v132
    %150 = vmatprep.subr.bf16.mxu0 0
    %151 = vmatpush1.bf16.msra.mxu0 %v134
    %152 = vmatprep.subr.bf16.mxu0 0
    %153 = vmatpush1.bf16.msra.mxu0 %v135
    %154 = vmatprep.subr.bf16.mxu0 0
    %155 = vmatpush1.bf16.msra.mxu0 %v136
    %156 = vmatprep.subr.bf16.mxu0 0
    %157 = vmatpush1.bf16.msra.mxu0 %v137
    %158 = vmatprep.subr.bf16.mxu0 0
    %159 = vmatpush1.bf16.msra.mxu0 %v138
    %160 = vmatprep.subr.bf16.mxu0 0
    %161 = vmatpush1.bf16.msra.mxu0 %v139
    %162 = vmatprep.subr.bf16.mxu0 0
    %163 = vmatpush1.bf16.msra.mxu0 %v140
    %164 = vmatprep.subr.bf16.mxu0 0
    %165 = vmatpush1.bf16.msra.mxu0 %v141
    %166 = vmatprep.subr.bf16.mxu0 0
    %167 = vmatpush1.bf16.msra.mxu0 0
    %168 = vmatprep.subr.bf16.mxu0 0
    %169 = vmatpush1.bf16.msra.mxu0 0
    %170 = vmatprep.subr.bf16.mxu0 0
    %171 = vmatpush1.bf16.msra.mxu0 0
    %172 = vmatprep.subr.bf16.mxu0 0
    %173 = vmatpush1.bf16.msra.mxu0 0
    %174 = vmatprep.subr.bf16.mxu0 0
    %175 = vmatpush1.bf16.msra.mxu0 0
    %176 = vmatprep.subr.bf16.mxu0 0
    %177 = vmatpush1.bf16.msra.mxu0 0
    %178 = vmatprep.subr.bf16.mxu0 0
    %179 = vmatpush1.bf16.msra.mxu0 0
    %180 = vmatprep.subr.bf16.mxu0 0
    %181 = vmatpush1.bf16.msra.mxu0 0
    %182 = vmatprep.mubr.bf16.mxu0 0
    %183 = vmatmul.mubr.bf16.gmra.mrb[0].mxu0 %v81
    %v184 = vpop.f32.mrb[0].mxu0
    %v185 = vadd.f32 %v101, %v184
    %v186 = vpop.f32.mrb[0].mxu0
    %v187 = vpop.f32.mrb[0].mxu0
    %v188 = vpop.f32.mrb[0].mxu0
    %189 = vdwg.mxu0
    %v190 = vmax.f32 %v185, 0.0
    %v191 = vpack.c.bf16 %v190, %v190
    %v192 = vld [vmem:[%s1 + $0x48] sm:$0xf]
    %v193 = vld [vmem:[%s1 + $0x4c] sm:$0xf]
    %v194 = vld [vmem:[%s1 + $0x50] sm:$0xf]
    %v195 = vld [vmem:[%s1 + $0x54] sm:$0xf]
    %v196 = vld [vmem:[%s1 + $0x58] sm:$0xf]
    %v197 = vld [vmem:[%s1 + $0x5c] sm:$0xf]
    %v198 = vld [vmem:[%s1 + $0x60] sm:$0xf]
    %v199 = vld [vmem:[%s1 + $0x64] sm:$0xf]
    %v200 = vld [vmem:[%s1 + $0x68] sm:$0xf]
    %v201 = vld [vmem:[%s1 + $0x6c] sm:$0xf]
    %v202 = vld [vmem:[%s1 + $0x70] sm:$0xf]
    %v203 = vld [vmem:[%s1 + $0x74] sm:$0xf]
    %v204 = vld [vmem:[%s1 + $0x78] sm:$0xf]
    %v205 = vld [vmem:[%s1 + $0x7c] sm:$0xf]
    %v206 = vld [vmem:[%s1 + $0x80] sm:$0xf]
    %v207 = vld [vmem:[%s1 + $0x84] sm:$0xf]
    %v208 = vlaneseq
    %v209 = vshrl.u32 %v208, 7
    %v210 = vsub.s32 0, %v209
    %v211 = vrot.slane %v18, %v210
    %v228 = vunpack.c.l.b16 %v192
    %v229 = vunpack.c.l.b16 %v193
    %v230 = vunpack.c.l.b16 %v194
    %v231 = vunpack.c.l.b16 %v195
    %v232 = vunpack.c.l.b16 %v196
    %v233 = vunpack.c.l.b16 %v197
    %v234 = vunpack.c.l.b16 %v198
    %v235 = vunpack.c.l.b16 %v199
    %v236 = vunpack.c.l.b16 %v200
    %v237 = vunpack.c.l.b16 %v201
    %v238 = vunpack.c.l.b16 %v202
    %v239 = vunpack.c.l.b16 %v203
    %v240 = vunpack.c.l.b16 %v204
    %v241 = vunpack.c.l.b16 %v205
    %v242 = vunpack.c.l.b16 %v206
    %v243 = vunpack.c.l.b16 %v207
    %v244 = vpack.c.b16 %v229, %v228
    %v245 = vpack.c.b16 %v231, %v230
    %v246 = vpack.c.b16 %v233, %v232
    %v247 = vpack.c.b16 %v235, %v234
    %v248 = vpack.c.b16 %v237, %v236
    %v249 = vpack.c.b16 %v239, %v238
    %v250 = vpack.c.b16 %v241, %v240
    %v251 = vpack.c.b16 %v243, %v242
    %260 = vmatprep.subr.bf16.mxu0 0
    %261 = vmatpush1.bf16.msra.mxu0 %v244
    %262 = vmatprep.subr.bf16.mxu0 0
    %263 = vmatpush1.bf16.msra.mxu0 %v245
    %264 = vmatprep.subr.bf16.mxu0 0
    %265 = vmatpush1.bf16.msra.mxu0 %v246
    %266 = vmatprep.subr.bf16.mxu0 0
    %267 = vmatpush1.bf16.msra.mxu0 %v247
    %268 = vmatprep.subr.bf16.mxu0 0
    %269 = vmatpush1.bf16.msra.mxu0 %v248
    %270 = vmatprep.subr.bf16.mxu0 0
    %271 = vmatpush1.bf16.msra.mxu0 %v249
    %272 = vmatprep.subr.bf16.mxu0 0
    %273 = vmatpush1.bf16.msra.mxu0 %v250
    %274 = vmatprep.subr.bf16.mxu0 0
    %275 = vmatpush1.bf16.msra.mxu0 %v251
    %276 = vmatprep.subr.bf16.mxu0 0
    %277 = vmatpush1.bf16.msra.mxu0 0
    %278 = vmatprep.subr.bf16.mxu0 0
    %279 = vmatpush1.bf16.msra.mxu0 0
    %280 = vmatprep.subr.bf16.mxu0 0
    %281 = vmatpush1.bf16.msra.mxu0 0
    %282 = vmatprep.subr.bf16.mxu0 0
    %283 = vmatpush1.bf16.msra.mxu0 0
    %284 = vmatprep.subr.bf16.mxu0 0
    %285 = vmatpush1.bf16.msra.mxu0 0
    %286 = vmatprep.subr.bf16.mxu0 0
    %287 = vmatpush1.bf16.msra.mxu0 0
    %288 = vmatprep.subr.bf16.mxu0 0
    %289 = vmatpush1.bf16.msra.mxu0 0
    %290 = vmatprep.subr.bf16.mxu0 0
    %291 = vmatpush1.bf16.msra.mxu0 0
    %292 = vmatprep.mubr.bf16.mxu0 0
    %293 = vmatmul.mubr.bf16.gmra.mrb[0].mxu0 %v191
    %v294 = vpop.f32.mrb[0].mxu0
    %v295 = vadd.f32 %v211, %v294
    %v296 = vpop.f32.mrb[0].mxu0
    %v297 = vpop.f32.mrb[0].mxu0
    %v298 = vpop.f32.mrb[0].mxu0
    %299 = vdwg.mxu0
    %v300 = vmax.f32 %v295, 0.0
    %v301 = vpack.c.bf16 %v300, %v300
    %v302 = vld [vmem:[%s1 + $0x88] sm:$0xf]
    %v303 = vld [vmem:[%s1 + $0x8c] sm:$0xf]
    %v304 = vld [vmem:[%s1 + $0x90] sm:$0xf]
    %v305 = vld [vmem:[%s1 + $0x94] sm:$0xf]
    %v306 = vld [vmem:[%s1 + $0x98] sm:$0xf]
    %v307 = vld [vmem:[%s1 + $0x9c] sm:$0xf]
    %v308 = vld [vmem:[%s1 + $0xa0] sm:$0xf]
    %v309 = vld [vmem:[%s1 + $0xa4] sm:$0xf]
    %v310 = vld [vmem:[%s1 + $0xa8] sm:$0xf]
    %v311 = vld [vmem:[%s1 + $0xac] sm:$0xf]
    %v312 = vld [vmem:[%s1 + $0xb0] sm:$0xf]
    %v313 = vld [vmem:[%s1 + $0xb4] sm:$0xf]
    %v314 = vld [vmem:[%s1 + $0xb8] sm:$0xf]
    %v315 = vld [vmem:[%s1 + $0xbc] sm:$0xf]
    %v316 = vld [vmem:[%s1 + $0xc0] sm:$0xf]
    %v317 = vld [vmem:[%s1 + $0xc4] sm:$0xf]
    %v318 = vlaneseq
    %v319 = vshrl.u32 %v318, 7
    %v320 = vsub.s32 0, %v319
    %v321 = vrot.slane %v19, %v320
    %v338 = vunpack.c.l.b16 %v302
    %v339 = vunpack.c.l.b16 %v303
    %v340 = vunpack.c.l.b16 %v304
    %v341 = vunpack.c.l.b16 %v305
    %v342 = vunpack.c.l.b16 %v306
    %v343 = vunpack.c.l.b16 %v307
    %v344 = vunpack.c.l.b16 %v308
    %v345 = vunpack.c.l.b16 %v309
    %v346 = vunpack.c.l.b16 %v310
    %v347 = vunpack.c.l.b16 %v311
    %v348 = vunpack.c.l.b16 %v312
    %v349 = vunpack.c.l.b16 %v313
    %v350 = vunpack.c.l.b16 %v314
    %v351 = vunpack.c.l.b16 %v315
    %v352 = vunpack.c.l.b16 %v316
    %v353 = vunpack.c.l.b16 %v317
    %v354 = vpack.c.b16 %v339, %v338
    %v355 = vpack.c.b16 %v341, %v340
    %v356 = vpack.c.b16 %v343, %v342
    %v357 = vpack.c.b16 %v345, %v344
    %v358 = vpack.c.b16 %v347, %v346
    %v359 = vpack.c.b16 %v349, %v348
    %v360 = vpack.c.b16 %v351, %v350
    %v361 = vpack.c.b16 %v353, %v352
    %370 = vmatprep.subr.bf16.mxu0 0
    %371 = vmatpush1.bf16.msra.mxu0 %v354
    %372 = vmatprep.subr.bf16.mxu0 0
    %373 = vmatpush1.bf16.msra.mxu0 %v355
    %374 = vmatprep.subr.bf16.mxu0 0
    %375 = vmatpush1.bf16.msra.mxu0 %v356
    %376 = vmatprep.subr.bf16.mxu0 0
    %377 = vmatpush1.bf16.msra.mxu0 %v357
    %378 = vmatprep.subr.bf16.mxu0 0
    %379 = vmatpush1.bf16.msra.mxu0 %v358
    %380 = vmatprep.subr.bf16.mxu0 0
    %381 = vmatpush1.bf16.msra.mxu0 %v359
    %382 = vmatprep.subr.bf16.mxu0 0
    %383 = vmatpush1.bf16.msra.mxu0 %v360
    %384 = vmatprep.subr.bf16.mxu0 0
    %385 = vmatpush1.bf16.msra.mxu0 %v361
    %386 = vmatprep.subr.bf16.mxu0 0
    %387 = vmatpush1.bf16.msra.mxu0 0
    %388 = vmatprep.subr.bf16.mxu0 0
    %389 = vmatpush1.bf16.msra.mxu0 0
    %390 = vmatprep.subr.bf16.mxu0 0
    %391 = vmatpush1.bf16.msra.mxu0 0
    %392 = vmatprep.subr.bf16.mxu0 0
    %393 = vmatpush1.bf16.msra.mxu0 0
    %394 = vmatprep.subr.bf16.mxu0 0
    %395 = vmatpush1.bf16.msra.mxu0 0
    %396 = vmatprep.subr.bf16.mxu0 0
    %397 = vmatpush1.bf16.msra.mxu0 0
    %398 = vmatprep.subr.bf16.mxu0 0
    %399 = vmatpush1.bf16.msra.mxu0 0
    %400 = vmatprep.subr.bf16.mxu0 0
    %401 = vmatpush1.bf16.msra.mxu0 0
    %402 = vmatprep.mubr.bf16.mxu0 0
    %403 = vmatmul.mubr.bf16.gmra.mrb[0].mxu0 %v301
    %v404 = vpop.f32.mrb[0].mxu0
    %v405 = vadd.f32 %v321, %v404
    %v406 = vpop.f32.mrb[0].mxu0
    %v407 = vpop.f32.mrb[0].mxu0
    %v408 = vpop.f32.mrb[0].mxu0
    %409 = vdwg.mxu0
    %v410 = vmax.f32 %v405, 0.0
    %v411 = vpack.c.bf16 %v410, %v410
    %v412 = vld [vmem:[%s1 + $0xc8] sm:$0xf]
    %v413 = vld [vmem:[%s1 + $0xcc] sm:$0xf]
    %v414 = vld [vmem:[%s1 + $0xd0] sm:$0xf]
    %v415 = vld [vmem:[%s1 + $0xd4] sm:$0xf]
    %v416 = vld [vmem:[%s1 + $0xd8] sm:$0xf]
    %v417 = vld [vmem:[%s1 + $0xdc] sm:$0xf]
    %v418 = vld [vmem:[%s1 + $0xe0] sm:$0xf]
    %v419 = vld [vmem:[%s1 + $0xe4] sm:$0xf]
    %v420 = vld [vmem:[%s1 + $0xe8] sm:$0xf]
    %v421 = vld [vmem:[%s1 + $0xec] sm:$0xf]
    %v422 = vld [vmem:[%s1 + $0xf0] sm:$0xf]
    %v423 = vld [vmem:[%s1 + $0xf4] sm:$0xf]
    %v424 = vld [vmem:[%s1 + $0xf8] sm:$0xf]
    %v425 = vld [vmem:[%s1 + $0xfc] sm:$0xf]
    %v426 = vld [vmem:[%s1 + $0x100] sm:$0xf]
    %v427 = vld [vmem:[%s1 + $0x104] sm:$0xf]
    %v428 = vlaneseq
    %v429 = vshrl.u32 %v428, 7
    %v430 = vsub.s32 0, %v429
    %v431 = vrot.slane %v20, %v430
    %v448 = vunpack.c.l.b16 %v412
    %v449 = vunpack.c.l.b16 %v413
    %v450 = vunpack.c.l.b16 %v414
    %v451 = vunpack.c.l.b16 %v415
    %v452 = vunpack.c.l.b16 %v416
    %v453 = vunpack.c.l.b16 %v417
    %v454 = vunpack.c.l.b16 %v418
    %v455 = vunpack.c.l.b16 %v419
    %v456 = vunpack.c.l.b16 %v420
    %v457 = vunpack.c.l.b16 %v421
    %v458 = vunpack.c.l.b16 %v422
    %v459 = vunpack.c.l.b16 %v423
    %v460 = vunpack.c.l.b16 %v424
    %v461 = vunpack.c.l.b16 %v425
    %v462 = vunpack.c.l.b16 %v426
    %v463 = vunpack.c.l.b16 %v427
    %v464 = vpack.c.b16 %v449, %v448
    %v465 = vpack.c.b16 %v451, %v450
    %v466 = vpack.c.b16 %v453, %v452
    %v467 = vpack.c.b16 %v455, %v454
    %v468 = vpack.c.b16 %v457, %v456
    %v469 = vpack.c.b16 %v459, %v458
    %v470 = vpack.c.b16 %v461, %v460
    %v471 = vpack.c.b16 %v463, %v462
    %480 = vmatprep.subr.bf16.mxu0 0
    %481 = vmatpush1.bf16.msra.mxu0 %v464
    %482 = vmatprep.subr.bf16.mxu0 0
    %483 = vmatpush1.bf16.msra.mxu0 %v465
    %484 = vmatprep.subr.bf16.mxu0 0
    %485 = vmatpush1.bf16.msra.mxu0 %v466
    %486 = vmatprep.subr.bf16.mxu0 0
    %487 = vmatpush1.bf16.msra.mxu0 %v467
    %488 = vmatprep.subr.bf16.mxu0 0
    %489 = vmatpush1.bf16.msra.mxu0 %v468
    %490 = vmatprep.subr.bf16.mxu0 0
    %491 = vmatpush1.bf16.msra.mxu0 %v469
    %492 = vmatprep.subr.bf16.mxu0 0
    %493 = vmatpush1.bf16.msra.mxu0 %v470
    %494 = vmatprep.subr.bf16.mxu0 0
    %495 = vmatpush1.bf16.msra.mxu0 %v471
    %496 = vmatprep.subr.bf16.mxu0 0
    %497 = vmatpush1.bf16.msra.mxu0 0
    %498 = vmatprep.subr.bf16.mxu0 0
    %499 = vmatpush1.bf16.msra.mxu0 0
    %500 = vmatprep.subr.bf16.mxu0 0
    %501 = vmatpush1.bf16.msra.mxu0 0
    %502 = vmatprep.subr.bf16.mxu0 0
    %503 = vmatpush1.bf16.msra.mxu0 0
    %504 = vmatprep.subr.bf16.mxu0 0
    %505 = vmatpush1.bf16.msra.mxu0 0
    %506 = vmatprep.subr.bf16.mxu0 0
    %507 = vmatpush1.bf16.msra.mxu0 0
    %508 = vmatprep.subr.bf16.mxu0 0
    %509 = vmatpush1.bf16.msra.mxu0 0
    %510 = vmatprep.subr.bf16.mxu0 0
    %511 = vmatpush1.bf16.msra.mxu0 0
    %512 = vmatprep.mubr.bf16.mxu0 0
    %513 = vmatmul.mubr.bf16.gmra.mrb[0].mxu0 %v411
    %v514 = vpop.f32.mrb[0].mxu0
    %v515 = vadd.f32 %v431, %v514
    %v516 = vpop.f32.mrb[0].mxu0
    %v517 = vpop.f32.mrb[0].mxu0
    %v518 = vpop.f32.mrb[0].mxu0
    %519 = vdwg.mxu0
    %v520 = vmax.f32 %v515, 0.0
    %v521 = vpack.c.bf16 %v520, %v520
    %v522 = vld [vmem:[%s1 + $0x108] sm:$0xf]
    %v523 = vld [vmem:[%s1 + $0x10c] sm:$0xf]
    %v524 = vld [vmem:[%s1 + $0x110] sm:$0xf]
    %v525 = vld [vmem:[%s1 + $0x114] sm:$0xf]
    %v526 = vld [vmem:[%s1 + $0x118] sm:$0xf]
    %v527 = vld [vmem:[%s1 + $0x11c] sm:$0xf]
    %v528 = vld [vmem:[%s1 + $0x120] sm:$0xf]
    %v529 = vld [vmem:[%s1 + $0x124] sm:$0xf]
    %v530 = vld [vmem:[%s1 + $0x128] sm:$0xf]
    %v531 = vld [vmem:[%s1 + $0x12c] sm:$0xf]
    %v532 = vld [vmem:[%s1 + $0x130] sm:$0xf]
    %v533 = vld [vmem:[%s1 + $0x134] sm:$0xf]
    %v534 = vld [vmem:[%s1 + $0x138] sm:$0xf]
    %v535 = vld [vmem:[%s1 + $0x13c] sm:$0xf]
    %v536 = vld [vmem:[%s1 + $0x140] sm:$0xf]
    %v537 = vld [vmem:[%s1 + $0x144] sm:$0xf]
    %v538 = vlaneseq
    %v539 = vshrl.u32 %v538, 7
    %v540 = vsub.s32 0, %v539
    %v541 = vrot.slane %v21, %v540
    %v558 = vunpack.c.l.b16 %v522
    %v559 = vunpack.c.l.b16 %v523
    %v560 = vunpack.c.l.b16 %v524
    %v561 = vunpack.c.l.b16 %v525
    %v562 = vunpack.c.l.b16 %v526
    %v563 = vunpack.c.l.b16 %v527
    %v564 = vunpack.c.l.b16 %v528
    %v565 = vunpack.c.l.b16 %v529
    %v566 = vunpack.c.l.b16 %v530
    %v567 = vunpack.c.l.b16 %v531
    %v568 = vunpack.c.l.b16 %v532
    %v569 = vunpack.c.l.b16 %v533
    %v570 = vunpack.c.l.b16 %v534
    %v571 = vunpack.c.l.b16 %v535
    %v572 = vunpack.c.l.b16 %v536
    %v573 = vunpack.c.l.b16 %v537
    %v574 = vpack.c.b16 %v559, %v558
    %v575 = vpack.c.b16 %v561, %v560
    %v576 = vpack.c.b16 %v563, %v562
    %v577 = vpack.c.b16 %v565, %v564
    %v578 = vpack.c.b16 %v567, %v566
    %v579 = vpack.c.b16 %v569, %v568
    %v580 = vpack.c.b16 %v571, %v570
    %v581 = vpack.c.b16 %v573, %v572
    %590 = vmatprep.subr.bf16.mxu0 0
    %591 = vmatpush1.bf16.msra.mxu0 %v574
    %592 = vmatprep.subr.bf16.mxu0 0
    %593 = vmatpush1.bf16.msra.mxu0 %v575
    %594 = vmatprep.subr.bf16.mxu0 0
    %595 = vmatpush1.bf16.msra.mxu0 %v576
    %596 = vmatprep.subr.bf16.mxu0 0
    %597 = vmatpush1.bf16.msra.mxu0 %v577
    %598 = vmatprep.subr.bf16.mxu0 0
    %599 = vmatpush1.bf16.msra.mxu0 %v578
    %600 = vmatprep.subr.bf16.mxu0 0
    %601 = vmatpush1.bf16.msra.mxu0 %v579
    %602 = vmatprep.subr.bf16.mxu0 0
    %603 = vmatpush1.bf16.msra.mxu0 %v580
    %604 = vmatprep.subr.bf16.mxu0 0
    %605 = vmatpush1.bf16.msra.mxu0 %v581
    %606 = vmatprep.subr.bf16.mxu0 0
    %607 = vmatpush1.bf16.msra.mxu0 0
    %608 = vmatprep.subr.bf16.mxu0 0
    %609 = vmatpush1.bf16.msra.mxu0 0
    %610 = vmatprep.subr.bf16.mxu0 0
    %611 = vmatpush1.bf16.msra.mxu0 0
    %612 = vmatprep.subr.bf16.mxu0 0
    %613 = vmatpush1.bf16.msra.mxu0 0
    %614 = vmatprep.subr.bf16.mxu0 0
    %615 = vmatpush1.bf16.msra.mxu0 0
    %616 = vmatprep.subr.bf16.mxu0 0
    %617 = vmatpush1.bf16.msra.mxu0 0
    %618 = vmatprep.subr.bf16.mxu0 0
    %619 = vmatpush1.bf16.msra.mxu0 0
    %620 = vmatprep.subr.bf16.mxu0 0
    %621 = vmatpush1.bf16.msra.mxu0 0
    %622 = vmatprep.mubr.bf16.mxu0 0
    %623 = vmatmul.mubr.bf16.gmra.mrb[0].mxu0 %v521
    %v624 = vpop.f32.mrb[0].mxu0
    %v625 = vadd.f32 %v541, %v624
    %v626 = vpop.f32.mrb[0].mxu0
    %v627 = vpop.f32.mrb[0].mxu0
    %v628 = vpop.f32.mrb[0].mxu0
    %629 = vdwg.mxu0
    %vm630 = vcmask 15360
    %631 = vst.msk [vmem:[#allocation2] sm:$0xff] %vm630, %v625
    // Predicated region
    $region14: #{censusnet_forward.1} parent=1 // pred_check
      _
    $region15: #{censusnet_forward.1} parent=1 // pred_check_branch
      %633 = sbr.rel (0) target = $region17
    $region16: #{censusnet_forward.1} parent=1 // pred_region
      %s635 = ssub.s32 128, 32
      %636 = vsyncadd [#allocation3], %s635
      %s637 = sshll.u32 [#allocation2], 4
      %s638 = int_to_ptr.vmem [resolvable:$true] %s637
      %643 = dma.vmem_to_hbm [thread:$0]  %s638, 32, %s3, [#allocation3], 32, 32, 2
    $region17: #{censusnet_forward.1} parent=1 // pred_fallthru
      _
    // Predicated region
    $region18: #{censusnet_forward.1} parent=1 // pred_check
      _
    $region19: #{censusnet_forward.1} parent=1 // pred_check_branch
      %645 = sbr.rel (0) target = $region21
    $region20: #{censusnet_forward.1} parent=1 // pred_region
      %646 = dma.done [#allocation3], 128
    $region21: #{censusnet_forward.1} parent=1 // pred_fallthru
      _
    %647 = vsyncpa [#allocation3], 1

</llo_original>
